<compile_context>
chip_gen: v6e
topology: v6e:2x2x1
jax: 0.10.0
libtpu: 0.0.40
codegen_flags: <defaults>
</compile_context>

<pallas_src>
import functools

import jax
import jax.numpy as jnp
from jax.experimental import pallas as pl
from jax.experimental.pallas import tpu as pltpu


def _cnn_kernel(ids_ref, emb_ref, convw_ref, convb_ref, fcw_ref, fcb_ref,
                out_ref, *, kernel_size, padding, pool_k, vocab, compute_dtype):
    # ids_ref  : (TB, L)            int32 token ids for this batch block
    # emb_ref  : (vocab, E)         embedding table (compute_dtype), replicated
    # convw_ref: (KE_pad, F)        im2col conv weight, rows (k, e) + zero pad
    # convb_ref: (1, F)             conv bias (f32)
    # fcw_ref  : (F, LBL_pad)       fc weight, transposed + zero-padded labels
    # fcb_ref  : (1, LBL_pad)       fc bias; padded label columns hold -1e30
    # out_ref  : (TB, LBL_pad)      log-probabilities (lane-dense store)
    tb, l = ids_ref.shape
    _, e = emb_ref.shape
    ke_pad, f = convw_ref.shape
    l_out = l + 2 * padding - kernel_size + 1          # stride=1, dilation=1

    # ---- Embedding gather, in-kernel, as a one-hot MXU matmul ---------------
    # vocab is tiny, so a (TB*L, vocab) one-hot @ (vocab, E) matmul is cheaper
    # (and far less HBM traffic) than materializing (B, L, E) outside.
    ids = ids_ref[...]                                                  # (TB, L)
    iota = jax.lax.broadcasted_iota(jnp.int32, (tb, l, vocab), 2)
    onehot = (ids[:, :, None] == iota).astype(compute_dtype)           # (TB, L, V)
    emb = jnp.dot(onehot.reshape(tb * l, vocab), emb_ref[...],
                  preferred_element_type=jnp.float32)                  # (TB*L, E)
    emb = emb.astype(compute_dtype).reshape(tb, l, e)                  # (TB, L, E)

    # ---- im2col without a padded scratch copy --------------------------------
    # Slice k covers original time steps [k-P, k-P+L_out); synthesize the zero
    # halo only where a boundary slice actually needs it.
    cols = []
    for k in range(kernel_size):
        start = k - padding
        pieces = []
        if start < 0:
            pieces.append(jnp.zeros((tb, -start, e), compute_dtype))
        lo = max(0, start)
        hi = min(l, start + l_out)
        pieces.append(emb[:, lo:hi, :])
        tail = start + l_out - l
        if tail > 0:
            pieces.append(jnp.zeros((tb, tail, e), compute_dtype))
        cols.append(pieces[0] if len(pieces) == 1
                    else jnp.concatenate(pieces, axis=1))
    # Zero-pad the contraction dim to the lane-aligned width of convw_ref.
    extra = ke_pad - kernel_size * e
    if extra > 0:
        cols.append(jnp.zeros((tb, l_out, extra), compute_dtype))
    lhs = jnp.concatenate(cols, axis=-1).reshape(tb * l_out, ke_pad)

    # ---- Conv as one MXU matmul, bias + ReLU in f32 ---------------------------
    conv = jnp.dot(lhs, convw_ref[...], preferred_element_type=jnp.float32)
    conv = jnp.maximum(conv + convb_ref[...], 0.0).reshape(tb, l_out, f)

    # ---- MaxPool1d(kernel_size = original L): single window -------------------
    pooled = jnp.max(conv[:, :pool_k, :], axis=1)                      # (TB, F)

    # ---- FC + numerically-stable LogSoftmax over the (padded) label axis ------
    # Padded label columns have weight 0 and bias -1e30, so they never win the
    # max and contribute exp(..)=0 to the sum; they are sliced off outside.
    logits = jnp.dot(pooled, fcw_ref[...],
                     preferred_element_type=jnp.float32) + fcb_ref[...]
    m = jnp.max(logits, axis=-1, keepdims=True)
    z = logits - m
    logz = jnp.log(jnp.sum(jnp.exp(z), axis=-1, keepdims=True))
    out_ref[...] = (z - logz).astype(out_ref.dtype)


def cnn_forward(x, emb_table, conv_w, conv_b, fc_w, fc_b, *,
                kernel_size, padding, stride=1, dilation=1,
                block_b=512, compute_dtype=jnp.float32):
    """x: (B, L) int token ids. Returns (B, labelset) log-probs (f32).

    block_b       : max batch rows per grid step. Capped so there are >= 2 grid
                    steps when B allows (keeps both v7x TensorCores busy and
                    preserves DMA/compute pipelining).
    compute_dtype : jnp.float32 or jnp.bfloat16 for the embedding table / conv
                    weights / gathered activations (MXU accumulation and all
                    post-matmul elementwise math stay f32).
    """
    assert stride == 1 and dilation == 1  # TODO(synk): only stride=1, dilation=1 supported.
    B, L = x.shape
    vocab, E = emb_table.shape
    F = conv_w.shape[0]
    labels = fc_w.shape[0]

    L_out = L + 2 * padding - kernel_size + 1
    # torch MaxPool1d(kernel_size=L) on a length-L_out conv output yields a
    # single window (matching the squeeze(1) in forward) only when
    # L <= L_out < 2L; enforce statically instead of silently clamping.
    assert L <= L_out < 2 * L, (
        f"MaxPool1d(kernel_size={L}) over conv output of length {L_out} does "
        "not yield a single pooling window; unsupported configuration.")

    # --- batch tile selection -------------------------------------------------
    align = 16 if compute_dtype == jnp.bfloat16 else 8
    if B <= 2 * align:
        TB = B                                  # single block == full dim, OK
    else:
        tb = min(block_b, -(-B // 2))           # keep >= 2 grid steps (v7x)
        TB = -(-tb // align) * align            # sublane-aligned tile
    num_blocks = -(-B // TB)
    B_pad = num_blocks * TB

    # Only the tiny id tensor is ever padded (kilobytes); id 0 is a valid index
    # and the resulting garbage rows are sliced off below.
    ids = x.astype(jnp.int32)
    if B_pad != B:
        ids = jnp.pad(ids, ((0, B_pad - B), (0, 0)))

    # --- weight prep (tiny, one-time) -----------------------------------------
    emb_tbl = emb_table.astype(compute_dtype)                       # (vocab, E)

    KE = kernel_size * E
    KE_pad = -(-KE // 128) * 128                # lane-aligned contraction dim
    # torch (F, E, K) -> (K, E, F) -> (K*E, F), rows indexed (k, e), then pad.
    conv_w_im2col = jnp.transpose(conv_w, (2, 1, 0)).reshape(KE, F)
    conv_w_im2col = jnp.pad(conv_w_im2col,
                            ((0, KE_pad - KE), (0, 0))).astype(compute_dtype)
    conv_b_1f = conv_b.reshape(1, F).astype(jnp.float32)

    LBL_pad = -(-labels // 128) * 128           # lane-dense output width
    fc_w_t = jnp.pad(fc_w.T.astype(jnp.float32),
                     ((0, 0), (0, LBL_pad - labels)))               # (F, LBL_pad)
    fc_b_pad = jnp.full((1, LBL_pad), -1e30, jnp.float32)
    fc_b_pad = fc_b_pad.at[0, :labels].set(fc_b.astype(jnp.float32))

    kernel = functools.partial(_cnn_kernel, kernel_size=kernel_size,
                               padding=padding, pool_k=L, vocab=vocab,
                               compute_dtype=compute_dtype)

    out = pl.pallas_call(
        kernel,
        out_shape=jax.ShapeDtypeStruct((B_pad, LBL_pad), jnp.float32),
        grid_spec=pltpu.PrefetchScalarGridSpec(
            num_scalar_prefetch=0,
            grid=(num_blocks,),
            in_specs=[
                pl.BlockSpec((TB, L), lambda b: (b, 0)),            # ids
                pl.BlockSpec((vocab, E), lambda b: (0, 0)),         # emb table
                pl.BlockSpec((KE_pad, F), lambda b: (0, 0)),        # conv W
                pl.BlockSpec((1, F), lambda b: (0, 0)),             # conv b
                pl.BlockSpec((F, LBL_pad), lambda b: (0, 0)),       # fc W^T
                pl.BlockSpec((1, LBL_pad), lambda b: (0, 0)),       # fc b
            ],
            out_specs=pl.BlockSpec((TB, LBL_pad), lambda b: (b, 0)),
        ),
        compiler_params=pltpu.CompilerParams(
            dimension_semantics=("parallel",),
            vmem_limit_bytes=32 * 1024 * 1024),
    )(ids, emb_tbl, conv_w_im2col, conv_b_1f, fc_w_t, fc_b_pad)

    return out[:B, :labels]


def _reference(x, emb_table, conv_w, conv_b, fc_w, fc_b, *, kernel_size, padding):
    """Pure-JAX reference mirroring the PyTorch forward."""
    B, L = x.shape
    embedded = jnp.take(emb_table, x, axis=0)                     # (B, L, E)
    emb_t = jnp.transpose(embedded, (0, 2, 1))                    # (B, E, L)
    out = jax.lax.conv_general_dilated(
        emb_t, conv_w, window_strides=(1,), padding=[(padding, padding)],
        dimension_numbers=("NCH", "OIH", "NCH"))                  # (B, F, L_out)
    out = jax.nn.relu(out + conv_b[None, :, None])
    pooled = jnp.max(out[:, :, :L], axis=-1)                      # (B, F)
    logits = pooled @ fc_w.T + fc_b                               # (B, labels)
    return jax.nn.log_softmax(logits, axis=1)


if __name__ == "__main__":
    # Small shapes consistent with the module.
    B, L = 2, 8                 # batch, sequence length
    vocab_size = 50
    embedding_dim = 32
    num_feature_maps = 16
    kernel_size = 3
    padding = 1
    labelset_size = 5

    key = jax.random.PRNGKey(0)
    k_emb, k_cw, k_cb, k_fw, k_fb, k_x = jax.random.split(key, 6)

    # Deterministic parameter init (mirrors init_emb's N(0, 0.1) for embeddings).
    emb_table = 0.1 * jax.random.normal(k_emb, (vocab_size, embedding_dim), jnp.float32)
    conv_w = 0.1 * jax.random.normal(
        k_cw, (num_feature_maps, embedding_dim, kernel_size), jnp.float32)
    conv_b = 0.1 * jax.random.normal(k_cb, (num_feature_maps,), jnp.float32)
    fc_w = 0.1 * jax.random.normal(k_fw, (labelset_size, num_feature_maps), jnp.float32)
    fc_b = 0.1 * jax.random.normal(k_fb, (labelset_size,), jnp.float32)

    x = jax.random.randint(k_x, (B, L), 0, vocab_size, dtype=jnp.int32)

    # --- f32, single block -----------------------------------------------------
    out = cnn_forward(x, emb_table, conv_w, conv_b, fc_w, fc_b,
                      kernel_size=kernel_size, padding=padding,
                      block_b=512, compute_dtype=jnp.float32)
    out = jax.block_until_ready(out)
    ref = _reference(x, emb_table, conv_w, conv_b, fc_w, fc_b,
                     kernel_size=kernel_size, padding=padding)
    assert out.shape == (B, labelset_size)
    assert jnp.allclose(out, ref, atol=1e-5, rtol=1e-5), (out, ref)

    # --- f32, multi-block grid with a ragged last block ------------------------
    B2 = 20
    x2 = jax.random.randint(jax.random.PRNGKey(7), (B2, L), 0, vocab_size,
                            dtype=jnp.int32)
    out2 = jax.block_until_ready(
        cnn_forward(x2, emb_table, conv_w, conv_b, fc_w, fc_b,
                    kernel_size=kernel_size, padding=padding,
                    block_b=512, compute_dtype=jnp.float32))
    ref2 = _reference(x2, emb_table, conv_w, conv_b, fc_w, fc_b,
                      kernel_size=kernel_size, padding=padding)
    assert out2.shape == (B2, labelset_size)
    assert jnp.allclose(out2, ref2, atol=1e-5, rtol=1e-5), (out2, ref2)

    # --- bf16 compute path (looser tolerance) ----------------------------------
    out_bf16 = jax.block_until_ready(
        cnn_forward(x, emb_table, conv_w, conv_b, fc_w, fc_b,
                    kernel_size=kernel_size, padding=padding,
                    block_b=512, compute_dtype=jnp.bfloat16))
    assert jnp.allclose(out_bf16, ref, atol=2e-2, rtol=2e-2), (out_bf16, ref)

    # NOTE: dropout_layer is defined in __init__ but never used in forward(),
    # so it is intentionally omitted.
    print("KERNEL_OK")
</pallas_src>

<mosaic_0001>
module attributes {stable_mosaic.version = 11 : i64} {
  func.func @_cnn_kernel(%arg0: i32, %arg1: memref<2x8xi32, #tpu.memory_space<vmem>>, %arg2: memref<50x32xf32, #tpu.memory_space<vmem>>, %arg3: memref<128x16xf32, #tpu.memory_space<vmem>>, %arg4: memref<1x16xf32, #tpu.memory_space<vmem>>, %arg5: memref<16x128xf32, #tpu.memory_space<vmem>>, %arg6: memref<1x128xf32, #tpu.memory_space<vmem>>, %arg7: memref<2x128xf32, #tpu.memory_space<vmem>>) attributes {dimension_semantics = [#tpu.dimension_semantics<parallel>], iteration_bounds = array<i64: 1>, scalar_prefetch = 0 : i64, scratch_operands = 0 : i64, tpu.core_type = #tpu.core_type<tc>, window_params = [{transform_indices = @transform_0, window_bounds = array<i64: 2, 8>}, {pipeline_mode = #tpu.pipeline_mode<synchronous>, transform_indices = @transform_1, window_bounds = array<i64: 50, 32>}, {pipeline_mode = #tpu.pipeline_mode<synchronous>, transform_indices = @transform_2, window_bounds = array<i64: 128, 16>}, {pipeline_mode = #tpu.pipeline_mode<synchronous>, transform_indices = @transform_3, window_bounds = array<i64: 1, 16>}, {pipeline_mode = #tpu.pipeline_mode<synchronous>, transform_indices = @transform_4, window_bounds = array<i64: 16, 128>}, {pipeline_mode = #tpu.pipeline_mode<synchronous>, transform_indices = @transform_5, window_bounds = array<i64: 1, 128>}, {transform_indices = @transform_6, window_bounds = array<i64: 2, 128>}]} {
    %c0 = arith.constant 0 : index
    %c0_0 = arith.constant 0 : index
    %0 = vector.load %arg1[%c0, %c0_0] : memref<2x8xi32, #tpu.memory_space<vmem>>, vector<2x8xi32>
    %1 = tpu.iota {dimensions = array<i32: 2>} : vector<2x8x50xi32>
    %2 = vector.shape_cast %0 : vector<2x8xi32> to vector<2x8x1xi32>
    %3 = vector.broadcast %2 : vector<2x8x1xi32> to vector<2x8x50xi32>
    %4 = arith.cmpi eq, %3, %1 : vector<2x8x50xi32>
    %5 = arith.extui %4 : vector<2x8x50xi1> to vector<2x8x50xi32>
    %6 = arith.sitofp %5 : vector<2x8x50xi32> to vector<2x8x50xf32>
    %7 = vector.shape_cast %6 : vector<2x8x50xf32> to vector<16x50xf32>
    %c0_1 = arith.constant 0 : index
    %c0_2 = arith.constant 0 : index
    %8 = vector.load %arg2[%c0_1, %c0_2] : memref<50x32xf32, #tpu.memory_space<vmem>>, vector<50x32xf32>
    %cst = arith.constant dense<0.000000e+00> : vector<16x32xf32>
    %9 = tpu.matmul %7, %8, %cst {dimension_numbers = #tpu.dot_dimension_numbers<[1], [0], [0], [1], [0, 0, 1, 1], [], []>} : vector<16x50xf32>, vector<50x32xf32>, vector<16x32xf32> -> vector<16x32xf32>
    %10 = vector.shape_cast %9 : vector<16x32xf32> to vector<2x8x32xf32>
    %cst_3 = arith.constant 0.000000e+00 : f32
    %11 = vector.broadcast %cst_3 : f32 to vector<2x1x32xf32>
    %12 = vector.extract_strided_slice %10 {offsets = [0, 0, 0], sizes = [2, 7, 32], strides = [1, 1, 1]} : vector<2x8x32xf32> to vector<2x7x32xf32>
    %13 = tpu.concatenate %11, %12 in 1 : vector<2x1x32xf32>, vector<2x7x32xf32> -> vector<2x8x32xf32>
    %14 = vector.extract_strided_slice %10 {offsets = [0, 1, 0], sizes = [2, 7, 32], strides = [1, 1, 1]} : vector<2x8x32xf32> to vector<2x7x32xf32>
    %cst_4 = arith.constant 0.000000e+00 : f32
    %15 = vector.broadcast %cst_4 : f32 to vector<2x1x32xf32>
    %16 = tpu.concatenate %14, %15 in 1 : vector<2x7x32xf32>, vector<2x1x32xf32> -> vector<2x8x32xf32>
    %cst_5 = arith.constant 0.000000e+00 : f32
    %17 = vector.broadcast %cst_5 : f32 to vector<2x8x32xf32>
    %18 = tpu.concatenate %13, %10, %16, %17 in 2 : vector<2x8x32xf32>, vector<2x8x32xf32>, vector<2x8x32xf32>, vector<2x8x32xf32> -> vector<2x8x128xf32>
    %19 = vector.shape_cast %18 : vector<2x8x128xf32> to vector<16x128xf32>
    %c0_6 = arith.constant 0 : index
    %c0_7 = arith.constant 0 : index
    %20 = vector.load %arg3[%c0_6, %c0_7] : memref<128x16xf32, #tpu.memory_space<vmem>>, vector<128x16xf32>
    %cst_8 = arith.constant dense<0.000000e+00> : vector<16x16xf32>
    %21 = tpu.matmul %19, %20, %cst_8 {dimension_numbers = #tpu.dot_dimension_numbers<[1], [0], [0], [1], [0, 0, 1, 1], [], []>} : vector<16x128xf32>, vector<128x16xf32>, vector<16x16xf32> -> vector<16x16xf32>
    %c0_9 = arith.constant 0 : index
    %c0_10 = arith.constant 0 : index
    %22 = vector.load %arg4[%c0_9, %c0_10] : memref<1x16xf32, #tpu.memory_space<vmem>>, vector<1x16xf32>
    %23 = vector.broadcast %22 : vector<1x16xf32> to vector<16x16xf32>
    %24 = arith.addf %21, %23 : vector<16x16xf32>
    %cst_11 = arith.constant 0.000000e+00 : f32
    %25 = vector.broadcast %cst_11 : f32 to vector<16x16xf32>
    %26 = arith.maximumf %24, %25 : vector<16x16xf32>
    %27 = vector.shape_cast %26 : vector<16x16xf32> to vector<2x8x16xf32>
    %cst_12 = arith.constant dense<0xFF800000> : vector<2x16xf32>
    %28 = vector.multi_reduction <maximumf>, %27, %cst_12 [1] : vector<2x8x16xf32> to vector<2x16xf32>
    %c0_13 = arith.constant 0 : index
    %c0_14 = arith.constant 0 : index
    %29 = vector.load %arg5[%c0_13, %c0_14] : memref<16x128xf32, #tpu.memory_space<vmem>>, vector<16x128xf32>
    %cst_15 = arith.constant dense<0.000000e+00> : vector<2x128xf32>
    %30 = tpu.matmul %28, %29, %cst_15 {dimension_numbers = #tpu.dot_dimension_numbers<[1], [0], [0], [1], [0, 0, 1, 1], [], []>} : vector<2x16xf32>, vector<16x128xf32>, vector<2x128xf32> -> vector<2x128xf32>
    %c0_16 = arith.constant 0 : index
    %c0_17 = arith.constant 0 : index
    %31 = vector.load %arg6[%c0_16, %c0_17] : memref<1x128xf32, #tpu.memory_space<vmem>>, vector<1x128xf32>
    %32 = vector.broadcast %31 : vector<1x128xf32> to vector<2x128xf32>
    %33 = arith.addf %30, %32 : vector<2x128xf32>
    %cst_18 = arith.constant dense<0xFF800000> : vector<2xf32>
    %34 = vector.multi_reduction <maximumf>, %33, %cst_18 [1] : vector<2x128xf32> to vector<2xf32>
    %35 = vector.shape_cast %34 : vector<2xf32> to vector<2x1xf32>
    %36 = vector.broadcast %35 : vector<2x1xf32> to vector<2x128xf32>
    %37 = arith.subf %33, %36 : vector<2x128xf32>
    %38 = math.exp %37 : vector<2x128xf32>
    %cst_19 = arith.constant dense<0.000000e+00> : vector<2xf32>
    %39 = vector.multi_reduction <add>, %38, %cst_19 [1] : vector<2x128xf32> to vector<2xf32>
    %40 = vector.shape_cast %39 : vector<2xf32> to vector<2x1xf32>
    %41 = math.log %40 : vector<2x1xf32>
    %42 = vector.broadcast %41 : vector<2x1xf32> to vector<2x128xf32>
    %43 = arith.subf %37, %42 : vector<2x128xf32>
    %c0_20 = arith.constant 0 : index
    %c0_21 = arith.constant 0 : index
    %44 = vector.load %arg7[%c0_20, %c0_21] : memref<2x128xf32, #tpu.memory_space<vmem>>, vector<2x128xf32>
    tpu.vector_store %arg7[%c0_20, %c0_21], %43 {strides = array<i32>} : memref<2x128xf32, #tpu.memory_space<vmem>>, vector<2x128xf32>,
    return
  }
  func.func @transform_0(%arg0: i32) -> (i32, i32) {
    %c0_i32 = arith.constant 0 : i32
    %c0_i32_0 = arith.constant 0 : i32
    return %arg0, %c0_i32 : i32, i32
  }
  func.func @transform_1(%arg0: i32) -> (i32, i32) {
    %c0_i32 = arith.constant 0 : i32
    %c0_i32_0 = arith.constant 0 : i32
    %c0_i32_1 = arith.constant 0 : i32
    return %c0_i32, %c0_i32_0 : i32, i32
  }
  func.func @transform_2(%arg0: i32) -> (i32, i32) {
    %c0_i32 = arith.constant 0 : i32
    %c0_i32_0 = arith.constant 0 : i32
    %c0_i32_1 = arith.constant 0 : i32
    return %c0_i32, %c0_i32_0 : i32, i32
  }
  func.func @transform_3(%arg0: i32) -> (i32, i32) {
    %c0_i32 = arith.constant 0 : i32
    %c0_i32_0 = arith.constant 0 : i32
    %c0_i32_1 = arith.constant 0 : i32
    return %c0_i32, %c0_i32_0 : i32, i32
  }
  func.func @transform_4(%arg0: i32) -> (i32, i32) {
    %c0_i32 = arith.constant 0 : i32
    %c0_i32_0 = arith.constant 0 : i32
    %c0_i32_1 = arith.constant 0 : i32
    return %c0_i32, %c0_i32_0 : i32, i32
  }
  func.func @transform_5(%arg0: i32) -> (i32, i32) {
    %c0_i32 = arith.constant 0 : i32
    %c0_i32_0 = arith.constant 0 : i32
    %c0_i32_1 = arith.constant 0 : i32
    return %c0_i32, %c0_i32_0 : i32, i32
  }
  func.func @transform_6(%arg0: i32) -> (i32, i32) {
    %c0_i32 = arith.constant 0 : i32
    %c0_i32_0 = arith.constant 0 : i32
    return %arg0, %c0_i32 : i32, i32
  }
}

</mosaic_0001>

<llo_original>
// kernel: tpu_custom_call.1
$region0: #{tpu_custom_call.1}
  #allocation0 [shape = 'u32[]', space=smem, size = 0x4, offset = 0x4, fixed_abs, tag = 'smem constant byte address 0x4 - core index']
  #allocation1 [shape = 'u32[144,128]{1,0:T(1,128)}', space=vmem, size = 0x12000, scoped, tag = 'internal scratch']
  %s0 = inlined_call_operand.vmem [shape: s32[2,8], index: 0, kind: input, shape index: {}]
  %s1 = inlined_call_operand.vmem [shape: f32[50,32], index: 1, kind: input, shape index: {}]
  %s2 = inlined_call_operand.vmem [shape: f32[128,16], index: 2, kind: input, shape index: {}]
  %s3 = inlined_call_operand.vmem [shape: f32[1,16], index: 3, kind: input, shape index: {}]
  %s4 = inlined_call_operand.vmem [shape: f32[16,128], index: 4, kind: input, shape index: {}]
  %s5 = inlined_call_operand.vmem [shape: f32[1,128], index: 5, kind: input, shape index: {}]
  %s6 = inlined_call_operand.hbm [shape: f32[2,128], index: 6, kind: output, shape index: {}]
  %s7 = sld [smem:[#allocation0]]
  $region34: #{tpu_custom_call.1} parent=0
    _
  %s9 = ssub.s32 1, %s7
  %s10 = scalar_select 0, %s9, %s7
  $region1: #{tpu_custom_call.1} parent=0
    #allocation2 [shape = 'u8[1024]{0}', space=vmem, size = 0x400, scoped, tag = 'output window, operand 0, single buffered']
    #allocation3 [shape = 's32[1]{0}', space=sflag, size = 0x4, scoped, tag = 'scoped memory for tpu_custom_call.1']
    %11 = vsyncpa [#allocation3], 0
    // Predicated region
    $region2: #{tpu_custom_call.1} parent=1 // pred_check
      _
    $region3: #{tpu_custom_call.1} parent=1 // pred_check_branch
      %13 = sbr.rel (0) target = $region5
    $region4: #{tpu_custom_call.1} parent=1 // pred_region
      _
    $region5: #{tpu_custom_call.1} parent=1 // pred_fallthru
      _
    // Predicated region
    $region6: #{tpu_custom_call.1} parent=1 // pred_check
      _
    $region7: #{tpu_custom_call.1} parent=1 // pred_check_branch
      %15 = sbr.rel (0) target = $region9
    $region8: #{tpu_custom_call.1} parent=1 // pred_region
      _
    $region9: #{tpu_custom_call.1} parent=1 // pred_fallthru
      _
    // Predicated region
    $region10: #{tpu_custom_call.1} parent=1 // pred_check
      _
    $region11: #{tpu_custom_call.1} parent=1 // pred_check_branch
      %17 = sbr.rel (0) target = $region13
    $region12: #{tpu_custom_call.1} parent=1 // pred_region
      _
    $region13: #{tpu_custom_call.1} parent=1 // pred_fallthru
      _
    // Predicated region
    $region14: #{tpu_custom_call.1} parent=1 // pred_check
      _
    $region15: #{tpu_custom_call.1} parent=1 // pred_check_branch
      %19 = sbr.rel (0) target = $region17
    $region16: #{tpu_custom_call.1} parent=1 // pred_region
      _
    $region17: #{tpu_custom_call.1} parent=1 // pred_fallthru
      _
    // Predicated region
    $region18: #{tpu_custom_call.1} parent=1 // pred_check
      _
    $region19: #{tpu_custom_call.1} parent=1 // pred_check_branch
      %21 = sbr.rel (0) target = $region21
    $region20: #{tpu_custom_call.1} parent=1 // pred_region
      _
    $region21: #{tpu_custom_call.1} parent=1 // pred_fallthru
      _
    // Predicated region
    $region22: #{tpu_custom_call.1} parent=1 // pred_check
      _
    $region23: #{tpu_custom_call.1} parent=1 // pred_check_branch
      %23 = sbr.rel (0) target = $region25
    $region24: #{tpu_custom_call.1} parent=1 // pred_region
      _
    $region25: #{tpu_custom_call.1} parent=1 // pred_fallthru
      _
    %v24 = vld [vmem:[%s0] sm:$0x3]
    %v25 = vlaneseq
    %v26 = vand.u32 %v25, 127
    %v27 = vlaneseq
    %v28 = vshrl.u32 %v27, 7
    %v29 = vsub.s32 0, %v28
    %v30 = vrot.slane %v24, %v29
    %32 = vbcast.lane.b32.xlu0 %v30, 256
    %v33 = vpop.permute.xlu0 %32
    %v34 = vlaneseq
    %v35 = vshrl.u32 %v34, 7
    %v36 = vsub.s32 1, %v35
    %v37 = vrot.slane %v24, %v36
    %39 = vbcast.lane.b32.xlu0 %v37, 256
    %v40 = vpop.permute.xlu0 %39
    %vm41 = vcmp.eq.s32.totalorder %v33, %v26
    %vm42 = vcmp.eq.s32.totalorder %v40, %v26
    %v43 = vsel %vm41, 1, 0
    %v44 = vsel %vm42, 1, 0
    %v45 = vcvt.s32.f32 %v43
    %v46 = vcvt.s32.f32 %v44
    %v47 = vld [vmem:[%s1] sm:$0xff]
    %v48 = vld [vmem:[%s1 + $0x8] sm:$0xff]
    %v49 = vld [vmem:[%s1 + $0x10] sm:$0xff]
    %v50 = vld [vmem:[%s1 + $0x18] sm:$0xff]
    %v51 = vld [vmem:[%s1 + $0x20] sm:$0xff]
    %v52 = vld [vmem:[%s1 + $0x28] sm:$0xff]
    %v53 = vld [vmem:[%s1 + $0x30] sm:$0x3]
    %vm54 = vcmask 408576
    %v56 = vsel %vm54, %v45, 0
    %v59 = vsel %vm54, %v46, 0
    %vm61 = vcmask 1041408
    %v63 = vsel %vm61, %v53, 0
    %65 = vmatprep.subr.mxu0 0.0
    %66 = vmatpush1.msra.mxu0 0.0
    %67 = vmatprep.subr.mxu0 0.0
    %68 = vmatpush1.msra.mxu0 0.0
    %69 = vmatprep.subr.mxu0 0.0
    %70 = vmatpush1.msra.mxu0 0.0
    %71 = vmatprep.subr.mxu0 0.0
    %72 = vmatpush1.msra.mxu0 0.0
    %73 = vmatprep.subr.mxu0 0.0
    %74 = vmatpush1.msra.mxu0 0.0
    %75 = vmatprep.subr.mxu0 0.0
    %76 = vmatpush1.msra.mxu0 0.0
    %77 = vmatprep.subr.mxu0 0.0
    %78 = vmatpush1.msra.mxu0 0.0
    %79 = vmatprep.subr.mxu0 0.0
    %80 = vmatpush1.msra.mxu0 0.0
    %81 = vmatprep.subr.mxu0 0.0
    %82 = vmatpush1.msra.mxu0 0.0
    %83 = vmatprep.subr.mxu0 0.0
    %84 = vmatpush1.msra.mxu0 %v63
    %85 = vmatprep.subr.mxu0 0.0
    %86 = vmatpush1.msra.mxu0 %v52
    %87 = vmatprep.subr.mxu0 0.0
    %88 = vmatpush1.msra.mxu0 %v51
    %89 = vmatprep.subr.mxu0 0.0
    %90 = vmatpush1.msra.mxu0 %v50
    %91 = vmatprep.subr.mxu0 0.0
    %92 = vmatpush1.msra.mxu0 %v49
    %93 = vmatprep.subr.mxu0 0.0
    %94 = vmatpush1.msra.mxu0 %v48
    %95 = vmatprep.subr.mxu0 0.0
    %96 = vmatpush1.msra.mxu0 %v47
    %97 = vmatprep.subr.mxu0 0.0
    %98 = vmatpush2.msra.mxu0 0.0
    %99 = vmatprep.subr.mxu0 0.0
    %100 = vmatpush2.msra.mxu0 0.0
    %101 = vmatprep.subr.mxu0 0.0
    %102 = vmatpush2.msra.mxu0 0.0
    %103 = vmatprep.subr.mxu0 0.0
    %104 = vmatpush2.msra.mxu0 0.0
    %105 = vmatprep.subr.mxu0 0.0
    %106 = vmatpush2.msra.mxu0 0.0
    %107 = vmatprep.subr.mxu0 0.0
    %108 = vmatpush2.msra.mxu0 0.0
    %109 = vmatprep.subr.mxu0 0.0
    %110 = vmatpush2.msra.mxu0 0.0
    %111 = vmatprep.subr.mxu0 0.0
    %112 = vmatpush2.msra.mxu0 0.0
    %113 = vmatprep.subr.mxu0 0.0
    %114 = vmatpush2.msra.mxu0 0.0
    %115 = vmatprep.subr.mxu0 0.0
    %116 = vmatpush2.msra.mxu0 0.0
    %117 = vmatprep.subr.mxu0 0.0
    %118 = vmatpush2.msra.mxu0 0.0
    %119 = vmatprep.subr.mxu0 0.0
    %120 = vmatpush2.msra.mxu0 0.0
    %121 = vmatprep.subr.mxu0 0.0
    %122 = vmatpush2.msra.mxu0 0.0
    %123 = vmatprep.subr.mxu0 0.0
    %124 = vmatpush2.msra.mxu0 0.0
    %125 = vmatprep.subr.mxu0 0.0
    %126 = vmatpush2.msra.mxu0 0.0
    %127 = vmatprep.subr.mxu0 0.0
    %128 = vmatpush2.msra.mxu0 0.0
    %129 = vmatprep.mubr.f32.mxu0 0.0
    %130 = vmatmul.mubr.f32.gmra.mxu0 %v56
    %v131 = vpop.f32.mrf.mxu0
    %v132 = vadd.f32 0.0, %v131
    %v133 = vpop.f32.mrf.mxu0
    %134 = vmatprep.mubr.f32.mxu0 0.0
    %135 = vmatmul.mubr.f32.gmra.mxu0 %v59
    %v136 = vpop.f32.mrf.mxu0
    %v137 = vadd.f32 0.0, %v136
    %v138 = vpop.f32.mrf.mxu0
    %139 = vdwg.mxu0
    %v142 = vrot.slane %v132, 7
    %v143 = vrot.slane %v137, 7
    %vm146 = vcmask 1040384
    %v147 = vsel %vm146, 0.0, %v142
    %v148 = vsel %vm146, 0.0, %v143
    %v149 = vrot.slane %v132, 1
    %v150 = vrot.slane %v137, 1
    %vm153 = vcmask 1046528
    %v154 = vsel %vm153, %v149, 0.0
    %v155 = vsel %vm153, %v150, 0.0
    %156 = vrot.lane.b32.xlu0 %v132, 32
    %v157 = vpop.permute.xlu0 %156
    %158 = vrot.lane.b32.xlu0 %v137, 32
    %v159 = vpop.permute.xlu0 %158
    %164 = vrot.lane.b32.xlu0 %v154, 64
    %v165 = vpop.permute.xlu0 %164
    %166 = vrot.lane.b32.xlu0 %v155, 64
    %v167 = vpop.permute.xlu0 %166
    %vm170 = vcmask 261120
    %v171 = vsel %vm170, %v147, %v157
    %v172 = vsel %vm170, %v148, %v159
    %vm173 = vcmask 523264
    %v174 = vsel %vm173, %v171, %v165
    %v175 = vsel %vm173, %v172, %v167
    %vm176 = vcmask 785408
    %v177 = vsel %vm176, %v174, 0.0
    %v178 = vsel %vm176, %v175, 0.0
    %v179 = vld [vmem:[%s2] sm:$0xff]
    %v180 = vld [vmem:[%s2 + $0x8] sm:$0xff]
    %v181 = vld [vmem:[%s2 + $0x10] sm:$0xff]
    %v182 = vld [vmem:[%s2 + $0x18] sm:$0xff]
    %v183 = vld [vmem:[%s2 + $0x20] sm:$0xff]
    %v184 = vld [vmem:[%s2 + $0x28] sm:$0xff]
    %v185 = vld [vmem:[%s2 + $0x30] sm:$0xff]
    %v186 = vld [vmem:[%s2 + $0x38] sm:$0xff]
    %v187 = vld [vmem:[%s2 + $0x40] sm:$0xff]
    %v188 = vld [vmem:[%s2 + $0x48] sm:$0xff]
    %v189 = vld [vmem:[%s2 + $0x50] sm:$0xff]
    %v190 = vld [vmem:[%s2 + $0x58] sm:$0xff]
    %v191 = vld [vmem:[%s2 + $0x60] sm:$0xff]
    %v192 = vld [vmem:[%s2 + $0x68] sm:$0xff]
    %v193 = vld [vmem:[%s2 + $0x70] sm:$0xff]
    %v194 = vld [vmem:[%s2 + $0x78] sm:$0xff]
    %v195 = vld [vmem:[%s3] sm:$0x1]
    %v197 = vlaneseq
    %v198 = vshrl.u32 %v197, 7
    %v199 = vsub.s32 0, %v198
    %v200 = vrot.slane %v195, %v199
    %202 = vmatprep.subr.mxu0 0.0
    %203 = vmatpush1.msra.mxu0 %v194
    %204 = vmatprep.subr.mxu0 0.0
    %205 = vmatpush1.msra.mxu0 %v193
    %206 = vmatprep.subr.mxu0 0.0
    %207 = vmatpush1.msra.mxu0 %v192
    %208 = vmatprep.subr.mxu0 0.0
    %209 = vmatpush1.msra.mxu0 %v191
    %210 = vmatprep.subr.mxu0 0.0
    %211 = vmatpush1.msra.mxu0 %v190
    %212 = vmatprep.subr.mxu0 0.0
    %213 = vmatpush1.msra.mxu0 %v189
    %214 = vmatprep.subr.mxu0 0.0
    %215 = vmatpush1.msra.mxu0 %v188
    %216 = vmatprep.subr.mxu0 0.0
    %217 = vmatpush1.msra.mxu0 %v187
    %218 = vmatprep.subr.mxu0 0.0
    %219 = vmatpush1.msra.mxu0 %v186
    %220 = vmatprep.subr.mxu0 0.0
    %221 = vmatpush1.msra.mxu0 %v185
    %222 = vmatprep.subr.mxu0 0.0
    %223 = vmatpush1.msra.mxu0 %v184
    %224 = vmatprep.subr.mxu0 0.0
    %225 = vmatpush1.msra.mxu0 %v183
    %226 = vmatprep.subr.mxu0 0.0
    %227 = vmatpush1.msra.mxu0 %v182
    %228 = vmatprep.subr.mxu0 0.0
    %229 = vmatpush1.msra.mxu0 %v181
    %230 = vmatprep.subr.mxu0 0.0
    %231 = vmatpush1.msra.mxu0 %v180
    %232 = vmatprep.subr.mxu0 0.0
    %233 = vmatpush1.msra.mxu0 %v179
    %234 = vmatprep.subr.mxu0 0.0
    %235 = vmatpush2.msra.mxu0 0.0
    %236 = vmatprep.subr.mxu0 0.0
    %237 = vmatpush2.msra.mxu0 0.0
    %238 = vmatprep.subr.mxu0 0.0
    %239 = vmatpush2.msra.mxu0 0.0
    %240 = vmatprep.subr.mxu0 0.0
    %241 = vmatpush2.msra.mxu0 0.0
    %242 = vmatprep.subr.mxu0 0.0
    %243 = vmatpush2.msra.mxu0 0.0
    %244 = vmatprep.subr.mxu0 0.0
    %245 = vmatpush2.msra.mxu0 0.0
    %246 = vmatprep.subr.mxu0 0.0
    %247 = vmatpush2.msra.mxu0 0.0
    %248 = vmatprep.subr.mxu0 0.0
    %249 = vmatpush2.msra.mxu0 0.0
    %250 = vmatprep.subr.mxu0 0.0
    %251 = vmatpush2.msra.mxu0 0.0
    %252 = vmatprep.subr.mxu0 0.0
    %253 = vmatpush2.msra.mxu0 0.0
    %254 = vmatprep.subr.mxu0 0.0
    %255 = vmatpush2.msra.mxu0 0.0
    %256 = vmatprep.subr.mxu0 0.0
    %257 = vmatpush2.msra.mxu0 0.0
    %258 = vmatprep.subr.mxu0 0.0
    %259 = vmatpush2.msra.mxu0 0.0
    %260 = vmatprep.subr.mxu0 0.0
    %261 = vmatpush2.msra.mxu0 0.0
    %262 = vmatprep.subr.mxu0 0.0
    %263 = vmatpush2.msra.mxu0 0.0
    %264 = vmatprep.subr.mxu0 0.0
    %265 = vmatpush2.msra.mxu0 0.0
    %266 = vmatprep.mubr.f32.mxu0 0.0
    %267 = vmatmul.mubr.f32.gmra.mxu0 %v177
    %v268 = vpop.f32.mrf.mxu0
    %v269 = vadd.f32 %v200, %v268
    %v270 = vpop.f32.mrf.mxu0
    %271 = vmatprep.mubr.f32.mxu0 0.0
    %272 = vmatmul.mubr.f32.gmra.mxu0 %v178
    %v273 = vpop.f32.mrf.mxu0
    %v274 = vadd.f32 %v200, %v273
    %v275 = vpop.f32.mrf.mxu0
    %276 = vdwg.mxu0
    %v277 = vmax.f32 %v269, 0.0
    %v278 = vmax.f32 %v274, 0.0
    %vm279 = vcmask 130048
    %v280 = vsel %vm279, %v277, -inf
    %v281 = vrot.slane %v280, 4
    %v282 = vmax.f32 %v280, %v281
    %v283 = vrot.slane %v282, 2
    %v284 = vmax.f32 %v282, %v283
    %v285 = vrot.slane %v284, 1
    %v286 = vmax.f32 %v284, %v285
    %v287 = vsel %vm279, %v278, -inf
    %v288 = vrot.slane %v287, 4
    %v289 = vmax.f32 %v287, %v288
    %v290 = vrot.slane %v289, 2
    %v291 = vmax.f32 %v289, %v290
    %v292 = vrot.slane %v291, 1
    %v293 = vmax.f32 %v291, %v292
    %v294 = vld [vmem:[%s4] sm:$0xff]
    %v295 = vld [vmem:[%s4 + $0x8] sm:$0xff]
    %v296 = vld [vmem:[%s5] sm:$0x1]
    %v298 = vlaneseq
    %v299 = vshrl.u32 %v298, 7
    %v300 = vsub.s32 0, %v299
    %v301 = vrot.slane %v296, %v300
    %vm305 = vcmask 1041409
    %v306 = vsel %vm305, %v293, %v286
    %v307 = vsel %vm279, %v306, 0
    %309 = vmatprep.subr.mxu0 0.0
    %310 = vmatpush1.msra.mxu0 0.0
    %311 = vmatprep.subr.mxu0 0.0
    %312 = vmatpush1.msra.mxu0 0.0
    %313 = vmatprep.subr.mxu0 0.0
    %314 = vmatpush1.msra.mxu0 0.0
    %315 = vmatprep.subr.mxu0 0.0
    %316 = vmatpush1.msra.mxu0 0.0
    %317 = vmatprep.subr.mxu0 0.0
    %318 = vmatpush1.msra.mxu0 0.0
    %319 = vmatprep.subr.mxu0 0.0
    %320 = vmatpush1.msra.mxu0 0.0
    %321 = vmatprep.subr.mxu0 0.0
    %322 = vmatpush1.msra.mxu0 0.0
    %323 = vmatprep.subr.mxu0 0.0
    %324 = vmatpush1.msra.mxu0 0.0
    %325 = vmatprep.subr.mxu0 0.0
    %326 = vmatpush1.msra.mxu0 0.0
    %327 = vmatprep.subr.mxu0 0.0
    %328 = vmatpush1.msra.mxu0 0.0
    %329 = vmatprep.subr.mxu0 0.0
    %330 = vmatpush1.msra.mxu0 0.0
    %331 = vmatprep.subr.mxu0 0.0
    %332 = vmatpush1.msra.mxu0 0.0
    %333 = vmatprep.subr.mxu0 0.0
    %334 = vmatpush1.msra.mxu0 0.0
    %335 = vmatprep.subr.mxu0 0.0
    %336 = vmatpush1.msra.mxu0 0.0
    %337 = vmatprep.subr.mxu0 0.0
    %338 = vmatpush1.msra.mxu0 %v295
    %339 = vmatprep.subr.mxu0 0.0
    %340 = vmatpush1.msra.mxu0 %v294
    %341 = vmatprep.subr.mxu0 0.0
    %342 = vmatpush2.msra.mxu0 0.0
    %343 = vmatprep.subr.mxu0 0.0
    %344 = vmatpush2.msra.mxu0 0.0
    %345 = vmatprep.subr.mxu0 0.0
    %346 = vmatpush2.msra.mxu0 0.0
    %347 = vmatprep.subr.mxu0 0.0
    %348 = vmatpush2.msra.mxu0 0.0
    %349 = vmatprep.subr.mxu0 0.0
    %350 = vmatpush2.msra.mxu0 0.0
    %351 = vmatprep.subr.mxu0 0.0
    %352 = vmatpush2.msra.mxu0 0.0
    %353 = vmatprep.subr.mxu0 0.0
    %354 = vmatpush2.msra.mxu0 0.0
    %355 = vmatprep.subr.mxu0 0.0
    %356 = vmatpush2.msra.mxu0 0.0
    %357 = vmatprep.subr.mxu0 0.0
    %358 = vmatpush2.msra.mxu0 0.0
    %359 = vmatprep.subr.mxu0 0.0
    %360 = vmatpush2.msra.mxu0 0.0
    %361 = vmatprep.subr.mxu0 0.0
    %362 = vmatpush2.msra.mxu0 0.0
    %363 = vmatprep.subr.mxu0 0.0
    %364 = vmatpush2.msra.mxu0 0.0
    %365 = vmatprep.subr.mxu0 0.0
    %366 = vmatpush2.msra.mxu0 0.0
    %367 = vmatprep.subr.mxu0 0.0
    %368 = vmatpush2.msra.mxu0 0.0
    %369 = vmatprep.subr.mxu0 0.0
    %370 = vmatpush2.msra.mxu0 0.0
    %371 = vmatprep.subr.mxu0 0.0
    %372 = vmatpush2.msra.mxu0 0.0
    %373 = vmatprep.mubr.f32.mxu0 0.0
    %374 = vmatmul.mubr.f32.gmra.mxu0 %v307
    %v375 = vpop.f32.mrf.mxu0
    %v376 = vadd.f32 %v301, %v375
    %v377 = vpop.f32.mrf.mxu0
    %378 = vdwg.mxu0
    %v379 = vsel %vm61, %v376, -inf
    %380 = vmax.xlane.f32.xlu0 %v379
    %v381 = vpop.xlane.xlu0 %380
    %v382 = vsub.f32 %v376, %v381
    %v383 = vmul.f32 %v382, 1.442695
    %v384 = vpow.pop %v383
    %v385 = vsel %vm61, %v384, 0.0
    %386 = vadd.xlane.f32.xlu0 %v385
    %v387 = vpop.xlane.xlu0 %386
    %v388 = vlog2.pop %v387
    %v389 = vmul.f32 %v388, 0.6931472
    %v390 = vsub.f32 %v382, %v389
    %391 = vst [vmem:[#allocation2] sm:$0x3] %v390
    // Predicated region
    $region26: #{tpu_custom_call.1} parent=1 // pred_check
      _
    $region27: #{tpu_custom_call.1} parent=1 // pred_check_branch
      %393 = sbr.rel (0) target = $region29
    $region28: #{tpu_custom_call.1} parent=1 // pred_region
      %s395 = ssub.s32 32, 32
      %396 = vsyncadd [#allocation3], %s395
      %s398 = sshll.u32 [#allocation2], 4
      %s399 = int_to_ptr.vmem [resolvable:$true] %s398
      %401 = dma.vmem_to_hbm [thread:$0]  %s399, 32, %s6, [#allocation3]
    $region29: #{tpu_custom_call.1} parent=1 // pred_fallthru
      _
    // Predicated region
    $region30: #{tpu_custom_call.1} parent=1 // pred_check
      _
    $region31: #{tpu_custom_call.1} parent=1 // pred_check_branch
      %403 = sbr.rel (0) target = $region33
    $region32: #{tpu_custom_call.1} parent=1 // pred_region
      %404 = dma.done [#allocation3], 32
    $region33: #{tpu_custom_call.1} parent=1 // pred_fallthru
      _
    %405 = vsyncpa [#allocation3], 1

</llo_original>
